<compile_context>
chip_gen: v5e
topology: v5e:2x2
jax: 0.10.0
libtpu: 0.0.40
codegen_flags: <defaults>
</compile_context>

<pallas_src>
import functools

import jax
import jax.numpy as jnp
from jax import lax
from jax.experimental import pallas as pl
from jax.experimental.pallas import tpu as pltpu


def _scaled_norm_kernel(disp_ref, dist_ref, dir_ref, *, r_inv, ncomp):
    # disp_ref: (ncomp, tn) lane-dense tile; components on sublanes, rows on lanes.
    x = disp_ref[...].astype(jnp.float32)               # (ncomp, tn)
    sq = x[0:1] * x[0:1]                                 # (1, tn); VALU only
    for c in range(1, ncomp):
        sq = sq + x[c:c + 1] * x[c:c + 1]
    inv = lax.rsqrt(sq)                                  # one EUP op per element
    dist = jnp.where(sq > 0.0, sq * inv, 0.0)            # == sqrt(sq); keeps dist(0)=0
    dist_ref[...] = (dist * r_inv).astype(dist_ref.dtype)
    # dir = x * inv (sublane broadcast) matches torch's disp/0 -> inf/nan behavior.
    dir_ref[...] = (x * inv).astype(dir_ref.dtype)       # single full-block store


def _round_up(x, mult):
    return ((x + mult - 1) // mult) * mult


def _cdiv(a, b):
    return -(-a // b)


def scaled_norm(disp, r, *, lane_tile=131072):
    """disp: (..., 3) array. Returns (dist, dir) shaped (..., 1) and (..., 3)."""
    orig_shape = disp.shape
    ncomp = orig_shape[-1]
    lead = orig_shape[:-1]
    m = 1
    for d in lead:
        m *= d

    # Lane-dense slab: components on sublanes, flattened rows on lanes.
    # (Ideally the producer would emit (3, M) directly; here we pay one XLA
    #  transpose in the wrapper -- the pad below fuses with it.)
    disp_t = disp.reshape(m, ncomp).T                    # (ncomp, m)

    # Balanced tiling: every block full-width, padding bounded by 128*num_steps.
    max_tn = max(128, _round_up(int(lane_tile), 128))
    num_steps = max(1, _cdiv(m, max_tn))
    if num_steps == 1 and m > 16384:
        num_steps = 2                                    # give megacore both cores work
    tn = _round_up(_cdiv(m, num_steps), 128)
    m_pad = tn * num_steps
    if m_pad != m:
        # Pad with 1.0 so padded lanes never hit rsqrt(0) (sliced off below).
        disp_t = jnp.pad(disp_t, ((0, 0), (0, m_pad - m)), constant_values=1.0)

    kernel = functools.partial(_scaled_norm_kernel, r_inv=1.0 / float(r), ncomp=ncomp)

    itemsize = jnp.dtype(disp.dtype).itemsize
    cost = pl.CostEstimate(
        flops=12 * m_pad,
        transcendentals=m_pad,
        bytes_accessed=(2 * ncomp + 1) * m_pad * itemsize,
    )

    dist_t, dir_t = pl.pallas_call(
        kernel,
        out_shape=(
            jax.ShapeDtypeStruct((1, m_pad), disp.dtype),
            jax.ShapeDtypeStruct((ncomp, m_pad), disp.dtype),
        ),
        grid_spec=pltpu.PrefetchScalarGridSpec(
            num_scalar_prefetch=0,
            grid=(num_steps,),
            in_specs=[pl.BlockSpec((ncomp, tn), lambda i: (0, i))],
            out_specs=[
                pl.BlockSpec((1, tn), lambda i: (0, i)),
                pl.BlockSpec((ncomp, tn), lambda i: (0, i)),
            ],
        ),
        compiler_params=pltpu.CompilerParams(
            dimension_semantics=("parallel",),
        ),
        cost_estimate=cost,
    )(disp_t)

    dist = dist_t[0, :m].reshape(*lead, 1)
    direction = dir_t[:, :m].T.reshape(*lead, ncomp)
    return dist, direction


if __name__ == "__main__":
    key = jax.random.PRNGKey(0)
    # Module has no learned params; r is the cutoff radius (constant).
    r = 5.0
    # Small shape consistent with interatomic displacement vectors: (batch, pairs, 3)
    disp = jax.random.normal(key, (2, 64, 3), dtype=jnp.float32) + 0.5

    dist, direction = scaled_norm(disp, r)
    jax.block_until_ready((dist, direction))

    # Reference check in plain JAX.
    ref_dist_raw = jnp.linalg.norm(disp, axis=-1, keepdims=True)
    ref_dir = disp / ref_dist_raw
    ref_dist = ref_dist_raw / r
    assert dist.shape == (2, 64, 1) and direction.shape == (2, 64, 3)
    assert jnp.allclose(dist, ref_dist, atol=1e-5, rtol=1e-5)
    assert jnp.allclose(direction, ref_dir, atol=1e-5, rtol=1e-5)

    print("KERNEL_OK")
</pallas_src>

<mosaic_0001>
module attributes {stable_mosaic.version = 11 : i64} {
  func.func @_scaled_norm_kernel(%arg0: i32, %arg1: memref<3x128xf32, #tpu.memory_space<vmem>>, %arg2: memref<1x128xf32, #tpu.memory_space<vmem>>, %arg3: memref<3x128xf32, #tpu.memory_space<vmem>>) attributes {dimension_semantics = [#tpu.dimension_semantics<parallel>], iteration_bounds = array<i64: 1>, scalar_prefetch = 0 : i64, scratch_operands = 0 : i64, tpu.core_type = #tpu.core_type<tc>, window_params = [{transform_indices = @transform_0, window_bounds = array<i64: 3, 128>}, {transform_indices = @transform_1, window_bounds = array<i64: 1, 128>}, {transform_indices = @transform_2, window_bounds = array<i64: 3, 128>}]} {
    %c0 = arith.constant 0 : index
    %c0_0 = arith.constant 0 : index
    %0 = vector.load %arg1[%c0, %c0_0] : memref<3x128xf32, #tpu.memory_space<vmem>>, vector<3x128xf32>
    %1 = vector.extract_strided_slice %0 {offsets = [0, 0], sizes = [1, 128], strides = [1, 1]} : vector<3x128xf32> to vector<1x128xf32>
    %2 = vector.extract_strided_slice %0 {offsets = [0, 0], sizes = [1, 128], strides = [1, 1]} : vector<3x128xf32> to vector<1x128xf32>
    %3 = arith.mulf %1, %2 : vector<1x128xf32>
    %4 = vector.extract_strided_slice %0 {offsets = [1, 0], sizes = [1, 128], strides = [1, 1]} : vector<3x128xf32> to vector<1x128xf32>
    %5 = vector.extract_strided_slice %0 {offsets = [1, 0], sizes = [1, 128], strides = [1, 1]} : vector<3x128xf32> to vector<1x128xf32>
    %6 = arith.mulf %4, %5 : vector<1x128xf32>
    %7 = arith.addf %3, %6 : vector<1x128xf32>
    %8 = vector.extract_strided_slice %0 {offsets = [2, 0], sizes = [1, 128], strides = [1, 1]} : vector<3x128xf32> to vector<1x128xf32>
    %9 = vector.extract_strided_slice %0 {offsets = [2, 0], sizes = [1, 128], strides = [1, 1]} : vector<3x128xf32> to vector<1x128xf32>
    %10 = arith.mulf %8, %9 : vector<1x128xf32>
    %11 = arith.addf %7, %10 : vector<1x128xf32>
    %12 = math.rsqrt %11 : vector<1x128xf32>
    %cst = arith.constant 0.000000e+00 : f32
    %13 = vector.broadcast %cst : f32 to vector<1x128xf32>
    %14 = arith.cmpf ogt, %11, %13 : vector<1x128xf32>
    %15 = arith.mulf %11, %12 : vector<1x128xf32>
    %cst_1 = arith.constant 0.000000e+00 : f32
    %16 = vector.broadcast %cst_1 : f32 to vector<1x128xf32>
    %17 = arith.select %14, %15, %16 : vector<1x128xi1>, vector<1x128xf32>
    %cst_2 = arith.constant 2.000000e-01 : f32
    %18 = vector.broadcast %cst_2 : f32 to vector<1x128xf32>
    %19 = arith.mulf %17, %18 : vector<1x128xf32>
    %c0_3 = arith.constant 0 : index
    %c0_4 = arith.constant 0 : index
    %20 = vector.load %arg2[%c0_3, %c0_4] : memref<1x128xf32, #tpu.memory_space<vmem>>, vector<1x128xf32>
    tpu.vector_store %arg2[%c0_3, %c0_4], %19 {strides = array<i32>} : memref<1x128xf32, #tpu.memory_space<vmem>>, vector<1x128xf32>,
    %21 = vector.broadcast %12 : vector<1x128xf32> to vector<3x128xf32>
    %22 = arith.mulf %0, %21 : vector<3x128xf32>
    %c0_5 = arith.constant 0 : index
    %c0_6 = arith.constant 0 : index
    %23 = vector.load %arg3[%c0_5, %c0_6] : memref<3x128xf32, #tpu.memory_space<vmem>>, vector<3x128xf32>
    tpu.vector_store %arg3[%c0_5, %c0_6], %22 {strides = array<i32>} : memref<3x128xf32, #tpu.memory_space<vmem>>, vector<3x128xf32>,
    return
  }
  func.func @transform_0(%arg0: i32) -> (i32, i32) {
    %c0_i32 = arith.constant 0 : i32
    %c0_i32_0 = arith.constant 0 : i32
    return %c0_i32, %arg0 : i32, i32
  }
  func.func @transform_1(%arg0: i32) -> (i32, i32) {
    %c0_i32 = arith.constant 0 : i32
    %c0_i32_0 = arith.constant 0 : i32
    return %c0_i32, %arg0 : i32, i32
  }
  func.func @transform_2(%arg0: i32) -> (i32, i32) {
    %c0_i32 = arith.constant 0 : i32
    %c0_i32_0 = arith.constant 0 : i32
    return %c0_i32, %arg0 : i32, i32
  }
}

</mosaic_0001>

<llo_original>
// kernel: tpu_custom_call.1
$region0: #{tpu_custom_call.1}
  #allocation0 [shape = 'u32[]', space=smem, size = 0x4, offset = 0x4, fixed_abs, tag = 'smem constant byte address 0x4 - core index']
  #allocation1 [shape = 'u32[72,128]{1,0:T(1,128)}', space=vmem, size = 0x9000, scoped, tag = 'internal scratch']
  %s0 = inlined_call_operand.hbm [shape: f32[3,128], index: 0, kind: input, shape index: {}]
  %s1 = inlined_call_operand.hbm [shape: f32[1,128], index: 1, kind: output, shape index: {0}]
  %s2 = inlined_call_operand.hbm [shape: f32[3,128], index: 2, kind: output, shape index: {1}]
  %3 = xla_tuple %s1, %s2
  %s4 = sld [smem:[#allocation0]]
  $region26: #{tpu_custom_call.1} parent=0
    _
  %s6 = ssub.s32 1, %s4
  %s7 = scalar_select 0, %s6, %s4
  $region1: #{tpu_custom_call.1} parent=0
    #allocation2 [shape = 'u8[2048]{0}', space=vmem, size = 0x800, scoped, tag = 'input window, operand 0, single buffered']
    #allocation3 [shape = 's32[1]{0}', space=sflag, size = 0x4, scoped, tag = 'scoped memory for tpu_custom_call.1']
    #allocation4 [shape = 's32[1]{0}', space=sflag, size = 0x4, scoped, tag = 'scoped memory for tpu_custom_call.1']
    #allocation5 [shape = 'u8[512]{0}', space=vmem, size = 0x400, scoped, tag = 'output window, operand 0, single buffered']
    #allocation6 [shape = 'u8[2048]{0}', space=vmem, size = 0x800, scoped, tag = 'output window, operand 1, single buffered']
    #allocation7 [shape = 's32[1]{0}', space=sflag, size = 0x4, scoped, tag = 'scoped memory for tpu_custom_call.1']
    %8 = vsyncpa [#allocation3], 0
    %9 = vsyncpa [#allocation4], 0
    %10 = vsyncpa [#allocation7], 0
    // Predicated region
    $region2: #{tpu_custom_call.1} parent=1 // pred_check
      _
    $region3: #{tpu_custom_call.1} parent=1 // pred_check_branch
      %12 = sbr.rel (0) target = $region5
    $region4: #{tpu_custom_call.1} parent=1 // pred_region
      %14 = vsyncadd [#allocation3], 0
      %s16 = sshll.u32 %s0, 4
      %s17 = int_to_ptr.hbm [resolvable:$true] %s16
      %s18 = sshll.u32 [#allocation2], 4
      %s19 = int_to_ptr.vmem [resolvable:$true] %s18
      %21 = dma.hbm_to_vmem [thread:$0]  %s17, 64, %s19, [#allocation3]
    $region5: #{tpu_custom_call.1} parent=1 // pred_fallthru
      _
    // Predicated region
    $region6: #{tpu_custom_call.1} parent=1 // pred_check
      _
    $region7: #{tpu_custom_call.1} parent=1 // pred_check_branch
      %23 = sbr.rel (0) target = $region9
    $region8: #{tpu_custom_call.1} parent=1 // pred_region
      %25 = dma.done [#allocation3], 64
    $region9: #{tpu_custom_call.1} parent=1 // pred_fallthru
      _
    %v26 = vld [vmem:[#allocation2] sm:$0x7]
    %v27 = vmul.f32 %v26, %v26
    %v29 = vrot.slane %v27, 1
    %v31 = vadd.f32 %v27, %v29
    %v32 = vrot.slane %v27, 2
    %v34 = vadd.f32 %v31, %v32
    %v35 = vrsqrt.pop %v34
    %v36 = vmul.f32 %v35, %v34
    %v37 = vmul.f32 %v36, %v35
    %v38 = vmul.f32 0.5, %v37
    %v39 = vsub.f32 1.5, %v38
    %v40 = vmul.f32 %v35, %v39
    %vm41 = vweird.f32 %v34
    %vm42 = vweird.f32 %v35
    %vm43 = vmor %vm41, %vm42
    %v44 = vsel %vm43, %v35, %v40
    %vm45 = vcmp.gt.f32.partialorder %v34, 0.0
    %v46 = vmul.f32 %v34, %v44
    %v47 = vsel %vm45, %v46, 0.0
    %v48 = vmul.f32 %v47, 0.2
    %49 = vst [vmem:[#allocation5] sm:$0x1] %v48
    %v50 = vperm.slane %v44, 0
    %v51 = vmul.f32 %v26, %v50
    %52 = vst [vmem:[#allocation6] sm:$0x7] %v51
    // Predicated region
    $region10: #{tpu_custom_call.1} parent=1 // pred_check
      _
    $region11: #{tpu_custom_call.1} parent=1 // pred_check_branch
      %54 = sbr.rel (0) target = $region13
    $region12: #{tpu_custom_call.1} parent=1 // pred_region
      %56 = vsyncadd [#allocation4], 0
      %s58 = sshll.u32 [#allocation5], 4
      %s59 = int_to_ptr.vmem [resolvable:$true] %s58
      %s60 = sshll.u32 %s1, 4
      %s61 = int_to_ptr.hbm [resolvable:$true] %s60
      %63 = dma.vmem_to_hbm [thread:$0]  %s59, 16, %s61, [#allocation4]
    $region13: #{tpu_custom_call.1} parent=1 // pred_fallthru
      _
    // Predicated region
    $region14: #{tpu_custom_call.1} parent=1 // pred_check
      _
    $region15: #{tpu_custom_call.1} parent=1 // pred_check_branch
      %65 = sbr.rel (0) target = $region17
    $region16: #{tpu_custom_call.1} parent=1 // pred_region
      %67 = vsyncadd [#allocation7], 0
      %s69 = sshll.u32 [#allocation6], 4
      %s70 = int_to_ptr.vmem [resolvable:$true] %s69
      %s71 = sshll.u32 %s2, 4
      %s72 = int_to_ptr.hbm [resolvable:$true] %s71
      %74 = dma.vmem_to_hbm [thread:$0]  %s70, 64, %s72, [#allocation7]
    $region17: #{tpu_custom_call.1} parent=1 // pred_fallthru
      _
    // Predicated region
    $region18: #{tpu_custom_call.1} parent=1 // pred_check
      _
    $region19: #{tpu_custom_call.1} parent=1 // pred_check_branch
      %76 = sbr.rel (0) target = $region21
    $region20: #{tpu_custom_call.1} parent=1 // pred_region
      %78 = dma.done [#allocation4], 16
    $region21: #{tpu_custom_call.1} parent=1 // pred_fallthru
      _
    // Predicated region
    $region22: #{tpu_custom_call.1} parent=1 // pred_check
      _
    $region23: #{tpu_custom_call.1} parent=1 // pred_check_branch
      %80 = sbr.rel (0) target = $region25
    $region24: #{tpu_custom_call.1} parent=1 // pred_region
      %82 = dma.done [#allocation7], 64
    $region25: #{tpu_custom_call.1} parent=1 // pred_fallthru
      _
    %83 = vsyncpa [#allocation3], 1
    %84 = vsyncpa [#allocation4], 1
    %85 = vsyncpa [#allocation7], 1

</llo_original>
